<compile_context>
chip_gen: v5e
topology: v5e:2x2
jax: 0.10.0
libtpu: 0.0.40
codegen_flags: <defaults>
</compile_context>

<pallas_src>
import jax
import jax.numpy as jnp
from jax.experimental import pallas as pl
from jax.experimental.pallas import tpu as pltpu

_PTS_PER_ROW = 128 // 4  # 32 points x (x, y, z, t) packed along the 128-lane axis


def _dequant_kernel(inv_quant_ref, quant_ref, pcd_ref, coords_ref):
    """One lane-dense tile of points.

    inv_quant_ref : (1, 128)  f32 -- (1/dx, 1/dy, 1/dz, 1/dt) tiled 32x
    quant_ref     : (1, 128)  f32 -- (dx, dy, dz, dt) tiled 32x
    pcd_ref       : (rc, 128) f32 -- 32 points x 4 coords packed along lanes
    coords_ref    : (rc, 128) f32 -- de-quantized coordinates (same packing)
    """
    # torch.div(pcd, quant) -> multiply by precomputed reciprocal (VALU only)
    q = pcd_ref[...] * inv_quant_ref[...]
    # truncation toward zero == the float->int cast inside ME.utils.sparse_collate
    q_int = q.astype(jnp.int32).astype(q.dtype)
    # sparse_featmap.coordinates[:, 1:] *= quant  (de-quantize voxel coords)
    coords_ref[...] = (q_int * quant_ref[...]).astype(coords_ref.dtype)


def semantic_model_forward(pcds_4d_batch, quant, w, b, *, tile_pts=65536):
    """Mirrors SemanticModel.forward over a list of [N_i, 4] point clouds.

    Returns (coordinates, features):
      coordinates: [N_total, 5]  (batch index, de-quantized x, y, z, t)
      features   : [N_total, n_cls]  (constant row 0.5*W + b per point)
    """
    n_cls = int(w.shape[-1])
    dtype = pcds_4d_batch[0].dtype
    lens = [int(p.shape[0]) for p in pcds_4d_batch]
    n_total = sum(lens)

    # Tile sizing: packed row count per tile must be a multiple of 8 sublanes.
    tile_step = 8 * _PTS_PER_ROW                          # 256 points
    tile_pts = max(tile_step, (tile_pts // tile_step) * tile_step)
    # Don't pick a tile larger than the (tile-rounded) problem itself.
    tile_pts = min(tile_pts, pl.cdiv(n_total, tile_step) * tile_step)
    n_pad = pl.cdiv(n_total, tile_pts) * tile_pts

    # Flat ragged concat (single pass) + pad only the tail to one tile boundary.
    pcds_flat = jnp.concatenate([p.astype(dtype) for p in pcds_4d_batch], axis=0)
    pcds_flat = jnp.pad(pcds_flat, ((0, n_pad - n_total), (0, 0)))

    rc_total = n_pad // _PTS_PER_ROW
    rc = tile_pts // _PTS_PER_ROW
    pcd_packed = pcds_flat.reshape(rc_total, 128)         # lane-dense view

    quant_flat = jnp.reshape(quant, (-1,)).astype(dtype)  # (4,)
    quant_row = jnp.tile(quant_flat, _PTS_PER_ROW).reshape(1, 128)
    inv_quant_row = jnp.tile(1.0 / quant_flat, _PTS_PER_ROW).reshape(1, 128)

    grid = (n_pad // tile_pts,)
    coords_packed = pl.pallas_call(
        _dequant_kernel,
        out_shape=jax.ShapeDtypeStruct((rc_total, 128), dtype),
        grid_spec=pltpu.PrefetchScalarGridSpec(
            num_scalar_prefetch=0,
            grid=grid,
            in_specs=[
                pl.BlockSpec((1, 128), lambda ti: (0, 0)),     # inv_quant (fetched once)
                pl.BlockSpec((1, 128), lambda ti: (0, 0)),     # quant     (fetched once)
                pl.BlockSpec((rc, 128), lambda ti: (ti, 0)),   # pcd tile (~1 MiB)
            ],
            out_specs=pl.BlockSpec((rc, 128), lambda ti: (ti, 0)),
        ),
        compiler_params=pltpu.CompilerParams(
            # Single streaming axis; parallel lets v7x shard grid steps across
            # its 2 TensorCores when the point count is large enough.
            dimension_semantics=("parallel",)),
    )(inv_quant_row, quant_row, pcd_packed)

    coords_xyzt = coords_packed.reshape(n_pad, 4)[:n_total]

    # Batch-index column (ME.sparse_collate layout) without a per-cloud loop.
    bcol = jnp.repeat(jnp.arange(len(lens), dtype=dtype),
                      jnp.asarray(lens), total_repeat_length=n_total)[:, None]
    coordinates = jnp.concatenate([bcol, coords_xyzt], axis=1)

    # MinkUNet head stand-in: input feature is the constant 0.5 for every point,
    # so the per-point logits row (0.5*W + b) is a compile-time constant.  Keep
    # it as a broadcast outside the kernel so consumers can fuse it.
    logit_row = (0.5 * w + b).reshape(1, -1).astype(dtype)
    features = jnp.broadcast_to(logit_row, (n_total, n_cls))
    return coordinates, features


if __name__ == "__main__":
    # SemanticModel config (synthetic); n_cls no longer needs to divide 128.
    n_cls = 19
    cfg_model = {"pos_dim": 4, "quant_size": 0.1,
                 "scene_bbox": [-50, -50, -4, 50, 50, 2]}
    dx = dy = dz = cfg_model["quant_size"]
    dt = 1.0
    quant = jnp.asarray([dx, dy, dz, dt], dtype=jnp.float32)          # (4,)

    # Deterministic parameters for the point-wise head (MinkUNet output layer
    # stand-in): in_channels=1 -> n_cls.
    w = jnp.arange(n_cls, dtype=jnp.float32)[None, :] * 0.01 + 0.1    # (1, n_cls)
    b = jnp.arange(n_cls, dtype=jnp.float32)[None, :] * -0.02         # (1, n_cls)

    # Synthetic batch: 2 point clouds with different lengths (exercises the
    # ragged flat-concat path), 4D points (x, y, z, t).
    key = jax.random.PRNGKey(0)
    k0, k1 = jax.random.split(key)
    pcd0 = jax.random.uniform(k0, (4096, 4), jnp.float32, minval=-10.0, maxval=10.0)
    pcd1 = jax.random.uniform(k1, (3000, 4), jnp.float32, minval=-10.0, maxval=10.0)
    pcds_4d_batch = [pcd0, pcd1]

    coords_out, feats_out = semantic_model_forward(pcds_4d_batch, quant, w, b)
    jax.block_until_ready((coords_out, feats_out))

    n0, n1 = pcd0.shape[0], pcd1.shape[0]
    n_total = n0 + n1
    assert coords_out.shape == (n_total, 5)
    assert feats_out.shape == (n_total, n_cls)

    # Reference check against pure-jnp math (same trunc-toward-zero semantics).
    pcd_all = jnp.concatenate([pcd0, pcd1], axis=0)
    q_ref = pcd_all * (1.0 / quant)
    ref_coords = q_ref.astype(jnp.int32).astype(jnp.float32) * quant
    assert bool(jnp.allclose(coords_out[:, 1:], ref_coords))

    ref_row = (0.5 * w + b).reshape(-1)
    assert bool(jnp.allclose(feats_out, jnp.broadcast_to(ref_row, feats_out.shape)))
    assert bool(jnp.all(coords_out[:n0, 0] == 0.0))
    assert bool(jnp.all(coords_out[n0:, 0] == 1.0))

    print("KERNEL_OK")
</pallas_src>

<mosaic_0001>
module attributes {stable_mosaic.version = 11 : i64} {
  func.func @_dequant_kernel(%arg0: i32, %arg1: memref<1x128xf32, #tpu.memory_space<vmem>>, %arg2: memref<1x128xf32, #tpu.memory_space<vmem>>, %arg3: memref<224x128xf32, #tpu.memory_space<vmem>>, %arg4: memref<224x128xf32, #tpu.memory_space<vmem>>) attributes {dimension_semantics = [#tpu.dimension_semantics<parallel>], iteration_bounds = array<i64: 1>, scalar_prefetch = 0 : i64, scratch_operands = 0 : i64, tpu.core_type = #tpu.core_type<tc>, window_params = [{pipeline_mode = #tpu.pipeline_mode<synchronous>, transform_indices = @transform_0, window_bounds = array<i64: 1, 128>}, {pipeline_mode = #tpu.pipeline_mode<synchronous>, transform_indices = @transform_1, window_bounds = array<i64: 1, 128>}, {transform_indices = @transform_2, window_bounds = array<i64: 224, 128>}, {transform_indices = @transform_3, window_bounds = array<i64: 224, 128>}]} {
    %c0 = arith.constant 0 : index
    %c0_0 = arith.constant 0 : index
    %0 = vector.load %arg3[%c0, %c0_0] : memref<224x128xf32, #tpu.memory_space<vmem>>, vector<224x128xf32>
    %c0_1 = arith.constant 0 : index
    %c0_2 = arith.constant 0 : index
    %1 = vector.load %arg1[%c0_1, %c0_2] : memref<1x128xf32, #tpu.memory_space<vmem>>, vector<1x128xf32>
    %2 = vector.broadcast %1 : vector<1x128xf32> to vector<224x128xf32>
    %3 = arith.mulf %0, %2 : vector<224x128xf32>
    %4 = arith.fptosi %3 : vector<224x128xf32> to vector<224x128xi32>
    %5 = arith.sitofp %4 : vector<224x128xi32> to vector<224x128xf32>
    %c0_3 = arith.constant 0 : index
    %c0_4 = arith.constant 0 : index
    %6 = vector.load %arg2[%c0_3, %c0_4] : memref<1x128xf32, #tpu.memory_space<vmem>>, vector<1x128xf32>
    %7 = vector.broadcast %6 : vector<1x128xf32> to vector<224x128xf32>
    %8 = arith.mulf %5, %7 : vector<224x128xf32>
    %c0_5 = arith.constant 0 : index
    %c0_6 = arith.constant 0 : index
    %9 = vector.load %arg4[%c0_5, %c0_6] : memref<224x128xf32, #tpu.memory_space<vmem>>, vector<224x128xf32>
    tpu.vector_store %arg4[%c0_5, %c0_6], %8 {strides = array<i32>} : memref<224x128xf32, #tpu.memory_space<vmem>>, vector<224x128xf32>,
    return
  }
  func.func @transform_0(%arg0: i32) -> (i32, i32) {
    %c0_i32 = arith.constant 0 : i32
    %c0_i32_0 = arith.constant 0 : i32
    %c0_i32_1 = arith.constant 0 : i32
    return %c0_i32, %c0_i32_0 : i32, i32
  }
  func.func @transform_1(%arg0: i32) -> (i32, i32) {
    %c0_i32 = arith.constant 0 : i32
    %c0_i32_0 = arith.constant 0 : i32
    %c0_i32_1 = arith.constant 0 : i32
    return %c0_i32, %c0_i32_0 : i32, i32
  }
  func.func @transform_2(%arg0: i32) -> (i32, i32) {
    %c0_i32 = arith.constant 0 : i32
    %c0_i32_0 = arith.constant 0 : i32
    return %arg0, %c0_i32 : i32, i32
  }
  func.func @transform_3(%arg0: i32) -> (i32, i32) {
    %c0_i32 = arith.constant 0 : i32
    %c0_i32_0 = arith.constant 0 : i32
    return %arg0, %c0_i32 : i32, i32
  }
}

</mosaic_0001>

<llo_original>
// kernel: tpu_custom_call.1
$region0: #{tpu_custom_call.1}
  #allocation0 [shape = 'u32[]', space=smem, size = 0x4, offset = 0x4, fixed_abs, tag = 'smem constant byte address 0x4 - core index']
  #allocation1 [shape = 'u32[72,128]{1,0:T(1,128)}', space=vmem, size = 0x9000, scoped, tag = 'internal scratch']
  %s0 = inlined_call_operand.hbm [shape: f32[1,128], index: 0, kind: input, shape index: {}]
  %s1 = inlined_call_operand.hbm [shape: f32[1,128], index: 1, kind: input, shape index: {}]
  %s2 = inlined_call_operand.hbm [shape: f32[224,128], index: 2, kind: input, shape index: {}]
  %s3 = inlined_call_operand.hbm [shape: f32[224,128], index: 3, kind: output, shape index: {}]
  %s4 = sld [smem:[#allocation0]]
  $region34: #{tpu_custom_call.1} parent=0
    _
  %s6 = ssub.s32 1, %s4
  %s7 = scalar_select 0, %s6, %s4
  $region1: #{tpu_custom_call.1} parent=0
    #allocation2 [shape = 'u8[512]{0}', space=vmem, size = 0x400, scoped, tag = 'input window, operand 0, single buffered']
    #allocation3 [shape = 's32[1]{0}', space=sflag, size = 0x4, scoped, tag = 'scoped memory for tpu_custom_call.1']
    #allocation4 [shape = 's32[1]{0}', space=sflag, size = 0x4, scoped, tag = 'scoped memory for tpu_custom_call.1']
    #allocation5 [shape = 'u8[512]{0}', space=vmem, size = 0x400, scoped, tag = 'input window, operand 1, single buffered']
    #allocation6 [shape = 's32[1]{0}', space=sflag, size = 0x4, scoped, tag = 'scoped memory for tpu_custom_call.1']
    #allocation7 [shape = 'u8[114688]{0}', space=vmem, size = 0x1c000, scoped, tag = 'input window, operand 2, single buffered']
    #allocation8 [shape = 'u8[114688]{0}', space=vmem, size = 0x1c000, scoped, tag = 'output window, operand 0, single buffered']
    %8 = vsyncpa [#allocation3], 0
    %9 = vsyncpa [#allocation6], 0
    %10 = vsyncpa [#allocation4], 0
    // Predicated region
    $region2: #{tpu_custom_call.1} parent=1 // pred_check
      _
    $region3: #{tpu_custom_call.1} parent=1 // pred_check_branch
      %12 = sbr.rel (0) target = $region5
    $region4: #{tpu_custom_call.1} parent=1 // pred_region
      %14 = vsyncadd [#allocation3], 0
      %s16 = sshll.u32 %s0, 4
      %s17 = int_to_ptr.hbm [resolvable:$true] %s16
      %s18 = sshll.u32 [#allocation2], 4
      %s19 = int_to_ptr.vmem [resolvable:$true] %s18
      %21 = dma.hbm_to_vmem [thread:$0]  %s17, 16, %s19, [#allocation3]
    $region5: #{tpu_custom_call.1} parent=1 // pred_fallthru
      _
    // Predicated region
    $region6: #{tpu_custom_call.1} parent=1 // pred_check
      _
    $region7: #{tpu_custom_call.1} parent=1 // pred_check_branch
      %23 = sbr.rel (0) target = $region9
    $region8: #{tpu_custom_call.1} parent=1 // pred_region
      %25 = vsyncadd [#allocation6], 0
      %s27 = sshll.u32 %s1, 4
      %s28 = int_to_ptr.hbm [resolvable:$true] %s27
      %s29 = sshll.u32 [#allocation5], 4
      %s30 = int_to_ptr.vmem [resolvable:$true] %s29
      %32 = dma.hbm_to_vmem [thread:$0]  %s28, 16, %s30, [#allocation6]
    $region9: #{tpu_custom_call.1} parent=1 // pred_fallthru
      _
    // Predicated region
    $region10: #{tpu_custom_call.1} parent=1 // pred_check
      _
    $region11: #{tpu_custom_call.1} parent=1 // pred_check_branch
      %34 = sbr.rel (0) target = $region13
    $region12: #{tpu_custom_call.1} parent=1 // pred_region
      %36 = vsyncadd [#allocation6], 0
      %s37 = sshll.u32 %s2, 4
      %s38 = int_to_ptr.hbm [resolvable:$true] %s37
      %s39 = sshll.u32 [#allocation7], 4
      %s40 = int_to_ptr.vmem [resolvable:$true] %s39
      %45 = dma.hbm_to_vmem [thread:$0]  %s38, 3584, %s40, [#allocation6], 128, 128, 8
    $region13: #{tpu_custom_call.1} parent=1 // pred_fallthru
      _
    // Predicated region
    $region14: #{tpu_custom_call.1} parent=1 // pred_check
      _
    $region15: #{tpu_custom_call.1} parent=1 // pred_check_branch
      %47 = sbr.rel (0) target = $region17
    $region16: #{tpu_custom_call.1} parent=1 // pred_region
      %49 = dma.done [#allocation3], 16
    $region17: #{tpu_custom_call.1} parent=1 // pred_fallthru
      _
    // Predicated region
    $region18: #{tpu_custom_call.1} parent=1 // pred_check
      _
    $region19: #{tpu_custom_call.1} parent=1 // pred_check_branch
      %51 = sbr.rel (0) target = $region21
    $region20: #{tpu_custom_call.1} parent=1 // pred_region
      %53 = dma.done [#allocation6], 16
    $region21: #{tpu_custom_call.1} parent=1 // pred_fallthru
      _
    // Predicated region
    $region22: #{tpu_custom_call.1} parent=1 // pred_check
      _
    $region23: #{tpu_custom_call.1} parent=1 // pred_check_branch
      %55 = sbr.rel (0) target = $region25
    $region24: #{tpu_custom_call.1} parent=1 // pred_region
      %57 = dma.done [#allocation6], 3584
    $region25: #{tpu_custom_call.1} parent=1 // pred_fallthru
      _
    %v58 = vld [vmem:[#allocation7] sm:$0xff]
    %v59 = vld [vmem:[#allocation7 + $0x8] sm:$0xff]
    %v60 = vld [vmem:[#allocation7 + $0x10] sm:$0xff]
    %v61 = vld [vmem:[#allocation7 + $0x18] sm:$0xff]
    %v62 = vld [vmem:[#allocation7 + $0x20] sm:$0xff]
    %v63 = vld [vmem:[#allocation7 + $0x28] sm:$0xff]
    %v64 = vld [vmem:[#allocation7 + $0x30] sm:$0xff]
    %v65 = vld [vmem:[#allocation7 + $0x38] sm:$0xff]
    %v66 = vld [vmem:[#allocation7 + $0x40] sm:$0xff]
    %v67 = vld [vmem:[#allocation7 + $0x48] sm:$0xff]
    %v68 = vld [vmem:[#allocation7 + $0x50] sm:$0xff]
    %v69 = vld [vmem:[#allocation7 + $0x58] sm:$0xff]
    %v70 = vld [vmem:[#allocation7 + $0x60] sm:$0xff]
    %v71 = vld [vmem:[#allocation7 + $0x68] sm:$0xff]
    %v72 = vld [vmem:[#allocation7 + $0x70] sm:$0xff]
    %v73 = vld [vmem:[#allocation7 + $0x78] sm:$0xff]
    %v74 = vld [vmem:[#allocation7 + $0x80] sm:$0xff]
    %v75 = vld [vmem:[#allocation7 + $0x88] sm:$0xff]
    %v76 = vld [vmem:[#allocation7 + $0x90] sm:$0xff]
    %v77 = vld [vmem:[#allocation7 + $0x98] sm:$0xff]
    %v78 = vld [vmem:[#allocation7 + $0xa0] sm:$0xff]
    %v79 = vld [vmem:[#allocation7 + $0xa8] sm:$0xff]
    %v80 = vld [vmem:[#allocation7 + $0xb0] sm:$0xff]
    %v81 = vld [vmem:[#allocation7 + $0xb8] sm:$0xff]
    %v82 = vld [vmem:[#allocation7 + $0xc0] sm:$0xff]
    %v83 = vld [vmem:[#allocation7 + $0xc8] sm:$0xff]
    %v84 = vld [vmem:[#allocation7 + $0xd0] sm:$0xff]
    %v85 = vld [vmem:[#allocation7 + $0xd8] sm:$0xff]
    %v86 = vld [vmem:[#allocation2] sm:$0x1]
    %v88 = vperm.slane %v86, 0
    %v90 = vmul.f32 %v58, %v88
    %v91 = vmul.f32 %v59, %v88
    %v92 = vmul.f32 %v60, %v88
    %v93 = vmul.f32 %v61, %v88
    %v94 = vmul.f32 %v62, %v88
    %v95 = vmul.f32 %v63, %v88
    %v96 = vmul.f32 %v64, %v88
    %v97 = vmul.f32 %v65, %v88
    %v98 = vmul.f32 %v66, %v88
    %v99 = vmul.f32 %v67, %v88
    %v100 = vmul.f32 %v68, %v88
    %v101 = vmul.f32 %v69, %v88
    %v102 = vmul.f32 %v70, %v88
    %v103 = vmul.f32 %v71, %v88
    %v104 = vmul.f32 %v72, %v88
    %v105 = vmul.f32 %v73, %v88
    %v106 = vmul.f32 %v74, %v88
    %v107 = vmul.f32 %v75, %v88
    %v108 = vmul.f32 %v76, %v88
    %v109 = vmul.f32 %v77, %v88
    %v110 = vmul.f32 %v78, %v88
    %v111 = vmul.f32 %v79, %v88
    %v112 = vmul.f32 %v80, %v88
    %v113 = vmul.f32 %v81, %v88
    %v114 = vmul.f32 %v82, %v88
    %v115 = vmul.f32 %v83, %v88
    %v116 = vmul.f32 %v84, %v88
    %v117 = vmul.f32 %v85, %v88
    %v118 = vcvt.f32.s32.to.zero.pseudo %v90
    %v119 = vcvt.f32.s32.to.zero.pseudo %v91
    %v120 = vcvt.f32.s32.to.zero.pseudo %v92
    %v121 = vcvt.f32.s32.to.zero.pseudo %v93
    %v122 = vcvt.f32.s32.to.zero.pseudo %v94
    %v123 = vcvt.f32.s32.to.zero.pseudo %v95
    %v124 = vcvt.f32.s32.to.zero.pseudo %v96
    %v125 = vcvt.f32.s32.to.zero.pseudo %v97
    %v126 = vcvt.f32.s32.to.zero.pseudo %v98
    %v127 = vcvt.f32.s32.to.zero.pseudo %v99
    %v128 = vcvt.f32.s32.to.zero.pseudo %v100
    %v129 = vcvt.f32.s32.to.zero.pseudo %v101
    %v130 = vcvt.f32.s32.to.zero.pseudo %v102
    %v131 = vcvt.f32.s32.to.zero.pseudo %v103
    %v132 = vcvt.f32.s32.to.zero.pseudo %v104
    %v133 = vcvt.f32.s32.to.zero.pseudo %v105
    %v134 = vcvt.f32.s32.to.zero.pseudo %v106
    %v135 = vcvt.f32.s32.to.zero.pseudo %v107
    %v136 = vcvt.f32.s32.to.zero.pseudo %v108
    %v137 = vcvt.f32.s32.to.zero.pseudo %v109
    %v138 = vcvt.f32.s32.to.zero.pseudo %v110
    %v139 = vcvt.f32.s32.to.zero.pseudo %v111
    %v140 = vcvt.f32.s32.to.zero.pseudo %v112
    %v141 = vcvt.f32.s32.to.zero.pseudo %v113
    %v142 = vcvt.f32.s32.to.zero.pseudo %v114
    %v143 = vcvt.f32.s32.to.zero.pseudo %v115
    %v144 = vcvt.f32.s32.to.zero.pseudo %v116
    %v145 = vcvt.f32.s32.to.zero.pseudo %v117
    %v146 = vcvt.s32.f32 %v118
    %v147 = vcvt.s32.f32 %v119
    %v148 = vcvt.s32.f32 %v120
    %v149 = vcvt.s32.f32 %v121
    %v150 = vcvt.s32.f32 %v122
    %v151 = vcvt.s32.f32 %v123
    %v152 = vcvt.s32.f32 %v124
    %v153 = vcvt.s32.f32 %v125
    %v154 = vcvt.s32.f32 %v126
    %v155 = vcvt.s32.f32 %v127
    %v156 = vcvt.s32.f32 %v128
    %v157 = vcvt.s32.f32 %v129
    %v158 = vcvt.s32.f32 %v130
    %v159 = vcvt.s32.f32 %v131
    %v160 = vcvt.s32.f32 %v132
    %v161 = vcvt.s32.f32 %v133
    %v162 = vcvt.s32.f32 %v134
    %v163 = vcvt.s32.f32 %v135
    %v164 = vcvt.s32.f32 %v136
    %v165 = vcvt.s32.f32 %v137
    %v166 = vcvt.s32.f32 %v138
    %v167 = vcvt.s32.f32 %v139
    %v168 = vcvt.s32.f32 %v140
    %v169 = vcvt.s32.f32 %v141
    %v170 = vcvt.s32.f32 %v142
    %v171 = vcvt.s32.f32 %v143
    %v172 = vcvt.s32.f32 %v144
    %v173 = vcvt.s32.f32 %v145
    %v174 = vld [vmem:[#allocation5] sm:$0x1]
    %v176 = vperm.slane %v174, 0
    %v178 = vmul.f32 %v146, %v176
    %v179 = vmul.f32 %v147, %v176
    %v180 = vmul.f32 %v148, %v176
    %v181 = vmul.f32 %v149, %v176
    %v182 = vmul.f32 %v150, %v176
    %v183 = vmul.f32 %v151, %v176
    %v184 = vmul.f32 %v152, %v176
    %v185 = vmul.f32 %v153, %v176
    %v186 = vmul.f32 %v154, %v176
    %v187 = vmul.f32 %v155, %v176
    %v188 = vmul.f32 %v156, %v176
    %v189 = vmul.f32 %v157, %v176
    %v190 = vmul.f32 %v158, %v176
    %v191 = vmul.f32 %v159, %v176
    %v192 = vmul.f32 %v160, %v176
    %v193 = vmul.f32 %v161, %v176
    %v194 = vmul.f32 %v162, %v176
    %v195 = vmul.f32 %v163, %v176
    %v196 = vmul.f32 %v164, %v176
    %v197 = vmul.f32 %v165, %v176
    %v198 = vmul.f32 %v166, %v176
    %v199 = vmul.f32 %v167, %v176
    %v200 = vmul.f32 %v168, %v176
    %v201 = vmul.f32 %v169, %v176
    %v202 = vmul.f32 %v170, %v176
    %v203 = vmul.f32 %v171, %v176
    %v204 = vmul.f32 %v172, %v176
    %v205 = vmul.f32 %v173, %v176
    %206 = vst [vmem:[#allocation8] sm:$0xff] %v178
    %207 = vst [vmem:[#allocation8 + $0x8] sm:$0xff] %v179
    %208 = vst [vmem:[#allocation8 + $0x10] sm:$0xff] %v180
    %209 = vst [vmem:[#allocation8 + $0x18] sm:$0xff] %v181
    %210 = vst [vmem:[#allocation8 + $0x20] sm:$0xff] %v182
    %211 = vst [vmem:[#allocation8 + $0x28] sm:$0xff] %v183
    %212 = vst [vmem:[#allocation8 + $0x30] sm:$0xff] %v184
    %213 = vst [vmem:[#allocation8 + $0x38] sm:$0xff] %v185
    %214 = vst [vmem:[#allocation8 + $0x40] sm:$0xff] %v186
    %215 = vst [vmem:[#allocation8 + $0x48] sm:$0xff] %v187
    %216 = vst [vmem:[#allocation8 + $0x50] sm:$0xff] %v188
    %217 = vst [vmem:[#allocation8 + $0x58] sm:$0xff] %v189
    %218 = vst [vmem:[#allocation8 + $0x60] sm:$0xff] %v190
    %219 = vst [vmem:[#allocation8 + $0x68] sm:$0xff] %v191
    %220 = vst [vmem:[#allocation8 + $0x70] sm:$0xff] %v192
    %221 = vst [vmem:[#allocation8 + $0x78] sm:$0xff] %v193
    %222 = vst [vmem:[#allocation8 + $0x80] sm:$0xff] %v194
    %223 = vst [vmem:[#allocation8 + $0x88] sm:$0xff] %v195
    %224 = vst [vmem:[#allocation8 + $0x90] sm:$0xff] %v196
    %225 = vst [vmem:[#allocation8 + $0x98] sm:$0xff] %v197
    %226 = vst [vmem:[#allocation8 + $0xa0] sm:$0xff] %v198
    %227 = vst [vmem:[#allocation8 + $0xa8] sm:$0xff] %v199
    %228 = vst [vmem:[#allocation8 + $0xb0] sm:$0xff] %v200
    %229 = vst [vmem:[#allocation8 + $0xb8] sm:$0xff] %v201
    %230 = vst [vmem:[#allocation8 + $0xc0] sm:$0xff] %v202
    %231 = vst [vmem:[#allocation8 + $0xc8] sm:$0xff] %v203
    %232 = vst [vmem:[#allocation8 + $0xd0] sm:$0xff] %v204
    %233 = vst [vmem:[#allocation8 + $0xd8] sm:$0xff] %v205
    // Predicated region
    $region26: #{tpu_custom_call.1} parent=1 // pred_check
      _
    $region27: #{tpu_custom_call.1} parent=1 // pred_check_branch
      %235 = sbr.rel (0) target = $region29
    $region28: #{tpu_custom_call.1} parent=1 // pred_region
      %237 = vsyncadd [#allocation4], 0
      %s238 = sshll.u32 [#allocation8], 4
      %s239 = int_to_ptr.vmem [resolvable:$true] %s238
      %s240 = sshll.u32 %s3, 4
      %s241 = int_to_ptr.hbm [resolvable:$true] %s240
      %246 = dma.vmem_to_hbm [thread:$0]  %s239, 3584, %s241, [#allocation4], 128, 128, 8
    $region29: #{tpu_custom_call.1} parent=1 // pred_fallthru
      _
    // Predicated region
    $region30: #{tpu_custom_call.1} parent=1 // pred_check
      _
    $region31: #{tpu_custom_call.1} parent=1 // pred_check_branch
      %248 = sbr.rel (0) target = $region33
    $region32: #{tpu_custom_call.1} parent=1 // pred_region
      %250 = dma.done [#allocation4], 3584
    $region33: #{tpu_custom_call.1} parent=1 // pred_fallthru
      _
    %251 = vsyncpa [#allocation3], 1
    %252 = vsyncpa [#allocation6], 1
    %253 = vsyncpa [#allocation4], 1

</llo_original>
